<compile_context>
chip_gen: v5e
topology: v5e:2x2
jax: 0.10.0
libtpu: 0.0.40
codegen_flags: <defaults>
</compile_context>

<pallas_src>
import jax
import jax.numpy as jnp
from jax.experimental import pallas as pl
from jax.experimental.pallas import tpu as pltpu

H1, H2 = 400, 200          # hidden sizes from the PyTorch module
LANE = 128
SUBLANE = 8


def _round_up(n, m):
    return ((n + m - 1) // m) * m


# ----------------------------- kernel body ---------------------------------

def actor_mlp_kernel(x_ref, w1_ref, b1_ref, w2_ref, b2_ref, w3_ref, b3_ref,
                     o_ref, h1_ref, h2_ref):
    # Layer 1: Linear + ReLU (MXU matmul, f32 accumulation), staged to VMEM.
    h1 = jnp.dot(x_ref[...], w1_ref[...], preferred_element_type=jnp.float32)
    h1_ref[...] = jnp.maximum(h1 + b1_ref[...], 0.0)

    # Layer 2: Linear + ReLU.
    h2 = jnp.dot(h1_ref[...].astype(w2_ref.dtype), w2_ref[...],
                 preferred_element_type=jnp.float32)
    h2_ref[...] = jnp.maximum(h2 + b2_ref[...], 0.0)

    # Layer 3: Linear + Tanh.
    h3 = jnp.dot(h2_ref[...].astype(w3_ref.dtype), w3_ref[...],
                 preferred_element_type=jnp.float32)
    o_ref[...] = jnp.tanh(h3 + b3_ref[...]).astype(o_ref.dtype)


# ----------------------------- wrapper --------------------------------------

def actor_forward(x, padded_params, output_size, *, block_batch=128):
    """x: (B, input_size) f32. padded_params: lane-padded dict from pad_actor_params."""
    w1, b1 = padded_params["w1"], padded_params["b1"]
    w2, b2 = padded_params["w2"], padded_params["b2"]
    w3, b3 = padded_params["w3"], padded_params["b3"]

    B, in_size = x.shape
    in_pad = w1.shape[0]
    h1_pad, h2_pad, out_pad = w1.shape[1], w2.shape[1], w3.shape[1]
    wdtype = w1.dtype

    # Batch tile: <=128 rows (keeps h1/h2 tiles modest), multiple of 8 sublanes.
    tb = min(block_batch, _round_up(max(B, 1), SUBLANE))
    b_pad = _round_up(B, tb)

    # Zero-pad x to (b_pad, in_pad); cast to the weight dtype (bf16 or f32).
    xp = jnp.zeros((b_pad, in_pad), wdtype).at[:B, :in_size].set(
        x.astype(wdtype))

    resident = lambda arr: pl.BlockSpec(arr.shape, lambda i: (0, 0))

    out = pl.pallas_call(
        actor_mlp_kernel,
        out_shape=jax.ShapeDtypeStruct((b_pad, out_pad), jnp.float32),
        grid=(b_pad // tb,),
        in_specs=[
            pl.BlockSpec((tb, in_pad), lambda i: (i, 0)),   # x: tiled over batch
            resident(w1), resident(b1),                     # weights stay resident
            resident(w2), resident(b2),
            resident(w3), resident(b3),
        ],
        out_specs=pl.BlockSpec((tb, out_pad), lambda i: (i, 0)),
        scratch_shapes=[
            pltpu.VMEM((tb, h1_pad), jnp.float32),          # h1 staging
            pltpu.VMEM((tb, h2_pad), jnp.float32),          # h2 staging
        ],
        compiler_params=pltpu.CompilerParams(
            dimension_semantics=("parallel",)),             # megacore on v7x
    )(xp, w1, b1, w2, b2, w3, b3)

    return out[:B, :output_size]


# ----------------------------- params ---------------------------------------

def init_linear(key, fan_in, fan_out):
    """torch.nn.Linear-style init: U(-1/sqrt(fan_in), +1/sqrt(fan_in)).
    Returns W as (in, out) and b as (1, out)."""
    kw, kb = jax.random.split(key)
    bound = 1.0 / jnp.sqrt(jnp.float32(fan_in))
    w = jax.random.uniform(kw, (fan_in, fan_out), jnp.float32, -bound, bound)
    b = jax.random.uniform(kb, (1, fan_out), jnp.float32, -bound, bound)
    return w, b


def init_actor_params(key, input_size, output_size):
    k1, k2, k3 = jax.random.split(key, 3)
    w1, b1 = init_linear(k1, input_size, H1)
    w2, b2 = init_linear(k2, H1, H2)
    w3, b3 = init_linear(k3, H2, output_size)
    return {"w1": w1, "b1": b1, "w2": w2, "b2": b2, "w3": w3, "b3": b3}


def pad_actor_params(params, input_size, output_size, weight_dtype=jnp.float32):
    """Zero-pad every feature dim to a multiple of 128 lanes and (optionally)
    cast weights to bf16. Biases stay f32 (added after f32 accumulation).
    Zero padding keeps the forward pass bit-for-bit on the real lanes:
    padded columns give relu(0)=0 / tanh(0)=0 and padded rows contribute 0."""
    in_pad = _round_up(input_size, LANE)
    h1_pad = _round_up(H1, LANE)       # 400 -> 512
    h2_pad = _round_up(H2, LANE)       # 200 -> 256
    out_pad = _round_up(output_size, LANE)

    def pad2(a, rows, cols, dt):
        buf = jnp.zeros((rows, cols), dt)
        return buf.at[:a.shape[0], :a.shape[1]].set(a.astype(dt))

    return {
        "w1": pad2(params["w1"], in_pad, h1_pad, weight_dtype),
        "b1": pad2(params["b1"], 1, h1_pad, jnp.float32),
        "w2": pad2(params["w2"], h1_pad, h2_pad, weight_dtype),
        "b2": pad2(params["b2"], 1, h2_pad, jnp.float32),
        "w3": pad2(params["w3"], h2_pad, out_pad, weight_dtype),
        "b3": pad2(params["b3"], 1, out_pad, jnp.float32),
    }


def actor_reference(x, p):
    h1 = jnp.maximum(x @ p["w1"] + p["b1"], 0.0)
    h2 = jnp.maximum(h1 @ p["w2"] + p["b2"], 0.0)
    return jnp.tanh(h2 @ p["w3"] + p["b3"])


# ----------------------------- demo / test ----------------------------------

if __name__ == "__main__":
    key = jax.random.PRNGKey(0)
    k_params, k_x = jax.random.split(key)

    # DDPG actor shapes (e.g. LunarLander continuous): state 8, action 2.
    input_size, output_size, batch = 8, 2, 2

    params = init_actor_params(k_params, input_size, output_size)
    x = jax.random.normal(k_x, (batch, input_size), jnp.float32)
    ref = actor_reference(x, params)

    # f32 path (tight tolerance).
    p_f32 = pad_actor_params(params, input_size, output_size, jnp.float32)
    out = jax.block_until_ready(actor_forward(x, p_f32, output_size))
    assert out.shape == (batch, output_size)
    assert jnp.allclose(out, ref, atol=1e-5, rtol=1e-5)

    # bf16-weight path (MXU-native on v5e/v6e/v7x; f32 accumulation).
    p_bf16 = pad_actor_params(params, input_size, output_size, jnp.bfloat16)
    out_bf16 = jax.block_until_ready(actor_forward(x, p_bf16, output_size))
    assert jnp.allclose(out_bf16, ref, atol=5e-2, rtol=5e-2)

    # Larger batch: exercises the batch grid, resident weights and the
    # partial last tile (300 -> padded to 384, grid of 3 tiles of 128).
    xb = jax.random.normal(jax.random.PRNGKey(1), (300, input_size),
                           jnp.float32)
    out_b = jax.block_until_ready(actor_forward(xb, p_f32, output_size))
    assert out_b.shape == (300, output_size)
    assert jnp.allclose(out_b, actor_reference(xb, params),
                        atol=1e-5, rtol=1e-5)

    print("KERNEL_OK")
</pallas_src>

<mosaic_0001>
module attributes {stable_mosaic.version = 11 : i64} {
  func.func @actor_mlp_kernel(%arg0: i32, %arg1: memref<8x128xf32, #tpu.memory_space<vmem>>, %arg2: memref<128x512xf32, #tpu.memory_space<vmem>>, %arg3: memref<1x512xf32, #tpu.memory_space<vmem>>, %arg4: memref<512x256xf32, #tpu.memory_space<vmem>>, %arg5: memref<1x256xf32, #tpu.memory_space<vmem>>, %arg6: memref<256x128xf32, #tpu.memory_space<vmem>>, %arg7: memref<1x128xf32, #tpu.memory_space<vmem>>, %arg8: memref<8x128xf32, #tpu.memory_space<vmem>>, %arg9: memref<8x512xf32, #tpu.memory_space<vmem>>, %arg10: memref<8x256xf32, #tpu.memory_space<vmem>>) attributes {dimension_semantics = [#tpu.dimension_semantics<parallel>], iteration_bounds = array<i64: 1>, scalar_prefetch = 0 : i64, scratch_operands = 2 : i64, tpu.core_type = #tpu.core_type<tc>, window_params = [{transform_indices = @transform_0, window_bounds = array<i64: 8, 128>}, {pipeline_mode = #tpu.pipeline_mode<synchronous>, transform_indices = @transform_1, window_bounds = array<i64: 128, 512>}, {pipeline_mode = #tpu.pipeline_mode<synchronous>, transform_indices = @transform_2, window_bounds = array<i64: 1, 512>}, {pipeline_mode = #tpu.pipeline_mode<synchronous>, transform_indices = @transform_3, window_bounds = array<i64: 512, 256>}, {pipeline_mode = #tpu.pipeline_mode<synchronous>, transform_indices = @transform_4, window_bounds = array<i64: 1, 256>}, {pipeline_mode = #tpu.pipeline_mode<synchronous>, transform_indices = @transform_5, window_bounds = array<i64: 256, 128>}, {pipeline_mode = #tpu.pipeline_mode<synchronous>, transform_indices = @transform_6, window_bounds = array<i64: 1, 128>}, {transform_indices = @transform_7, window_bounds = array<i64: 8, 128>}]} {
    %c0 = arith.constant 0 : index
    %c0_0 = arith.constant 0 : index
    %0 = vector.load %arg1[%c0, %c0_0] : memref<8x128xf32, #tpu.memory_space<vmem>>, vector<8x128xf32>
    %c0_1 = arith.constant 0 : index
    %c0_2 = arith.constant 0 : index
    %1 = vector.load %arg2[%c0_1, %c0_2] : memref<128x512xf32, #tpu.memory_space<vmem>>, vector<128x512xf32>
    %cst = arith.constant dense<0.000000e+00> : vector<8x512xf32>
    %2 = tpu.matmul %0, %1, %cst {dimension_numbers = #tpu.dot_dimension_numbers<[1], [0], [0], [1], [0, 0, 1, 1], [], []>} : vector<8x128xf32>, vector<128x512xf32>, vector<8x512xf32> -> vector<8x512xf32>
    %c0_3 = arith.constant 0 : index
    %c0_4 = arith.constant 0 : index
    %3 = vector.load %arg3[%c0_3, %c0_4] : memref<1x512xf32, #tpu.memory_space<vmem>>, vector<1x512xf32>
    %4 = vector.broadcast %3 : vector<1x512xf32> to vector<8x512xf32>
    %5 = arith.addf %2, %4 : vector<8x512xf32>
    %cst_5 = arith.constant 0.000000e+00 : f32
    %6 = vector.broadcast %cst_5 : f32 to vector<8x512xf32>
    %7 = arith.maximumf %5, %6 : vector<8x512xf32>
    %c0_6 = arith.constant 0 : index
    %c0_7 = arith.constant 0 : index
    %8 = vector.load %arg9[%c0_6, %c0_7] : memref<8x512xf32, #tpu.memory_space<vmem>>, vector<8x512xf32>
    tpu.vector_store %arg9[%c0_6, %c0_7], %7 {strides = array<i32>} : memref<8x512xf32, #tpu.memory_space<vmem>>, vector<8x512xf32>,
    %c0_8 = arith.constant 0 : index
    %c0_9 = arith.constant 0 : index
    %9 = vector.load %arg9[%c0_8, %c0_9] : memref<8x512xf32, #tpu.memory_space<vmem>>, vector<8x512xf32>
    %c0_10 = arith.constant 0 : index
    %c0_11 = arith.constant 0 : index
    %10 = vector.load %arg4[%c0_10, %c0_11] : memref<512x256xf32, #tpu.memory_space<vmem>>, vector<512x256xf32>
    %cst_12 = arith.constant dense<0.000000e+00> : vector<8x256xf32>
    %11 = tpu.matmul %9, %10, %cst_12 {dimension_numbers = #tpu.dot_dimension_numbers<[1], [0], [0], [1], [0, 0, 1, 1], [], []>} : vector<8x512xf32>, vector<512x256xf32>, vector<8x256xf32> -> vector<8x256xf32>
    %c0_13 = arith.constant 0 : index
    %c0_14 = arith.constant 0 : index
    %12 = vector.load %arg5[%c0_13, %c0_14] : memref<1x256xf32, #tpu.memory_space<vmem>>, vector<1x256xf32>
    %13 = vector.broadcast %12 : vector<1x256xf32> to vector<8x256xf32>
    %14 = arith.addf %11, %13 : vector<8x256xf32>
    %cst_15 = arith.constant 0.000000e+00 : f32
    %15 = vector.broadcast %cst_15 : f32 to vector<8x256xf32>
    %16 = arith.maximumf %14, %15 : vector<8x256xf32>
    %c0_16 = arith.constant 0 : index
    %c0_17 = arith.constant 0 : index
    %17 = vector.load %arg10[%c0_16, %c0_17] : memref<8x256xf32, #tpu.memory_space<vmem>>, vector<8x256xf32>
    tpu.vector_store %arg10[%c0_16, %c0_17], %16 {strides = array<i32>} : memref<8x256xf32, #tpu.memory_space<vmem>>, vector<8x256xf32>,
    %c0_18 = arith.constant 0 : index
    %c0_19 = arith.constant 0 : index
    %18 = vector.load %arg10[%c0_18, %c0_19] : memref<8x256xf32, #tpu.memory_space<vmem>>, vector<8x256xf32>
    %c0_20 = arith.constant 0 : index
    %c0_21 = arith.constant 0 : index
    %19 = vector.load %arg6[%c0_20, %c0_21] : memref<256x128xf32, #tpu.memory_space<vmem>>, vector<256x128xf32>
    %cst_22 = arith.constant dense<0.000000e+00> : vector<8x128xf32>
    %20 = tpu.matmul %18, %19, %cst_22 {dimension_numbers = #tpu.dot_dimension_numbers<[1], [0], [0], [1], [0, 0, 1, 1], [], []>} : vector<8x256xf32>, vector<256x128xf32>, vector<8x128xf32> -> vector<8x128xf32>
    %c0_23 = arith.constant 0 : index
    %c0_24 = arith.constant 0 : index
    %21 = vector.load %arg7[%c0_23, %c0_24] : memref<1x128xf32, #tpu.memory_space<vmem>>, vector<1x128xf32>
    %22 = vector.broadcast %21 : vector<1x128xf32> to vector<8x128xf32>
    %23 = arith.addf %20, %22 : vector<8x128xf32>
    %24 = math.tanh %23 : vector<8x128xf32>
    %c0_25 = arith.constant 0 : index
    %c0_26 = arith.constant 0 : index
    %25 = vector.load %arg8[%c0_25, %c0_26] : memref<8x128xf32, #tpu.memory_space<vmem>>, vector<8x128xf32>
    tpu.vector_store %arg8[%c0_25, %c0_26], %24 {strides = array<i32>} : memref<8x128xf32, #tpu.memory_space<vmem>>, vector<8x128xf32>,
    return
  }
  func.func @transform_0(%arg0: i32) -> (i32, i32) {
    %c0_i32 = arith.constant 0 : i32
    %c0_i32_0 = arith.constant 0 : i32
    return %arg0, %c0_i32 : i32, i32
  }
  func.func @transform_1(%arg0: i32) -> (i32, i32) {
    %c0_i32 = arith.constant 0 : i32
    %c0_i32_0 = arith.constant 0 : i32
    %c0_i32_1 = arith.constant 0 : i32
    return %c0_i32, %c0_i32_0 : i32, i32
  }
  func.func @transform_2(%arg0: i32) -> (i32, i32) {
    %c0_i32 = arith.constant 0 : i32
    %c0_i32_0 = arith.constant 0 : i32
    %c0_i32_1 = arith.constant 0 : i32
    return %c0_i32, %c0_i32_0 : i32, i32
  }
  func.func @transform_3(%arg0: i32) -> (i32, i32) {
    %c0_i32 = arith.constant 0 : i32
    %c0_i32_0 = arith.constant 0 : i32
    %c0_i32_1 = arith.constant 0 : i32
    return %c0_i32, %c0_i32_0 : i32, i32
  }
  func.func @transform_4(%arg0: i32) -> (i32, i32) {
    %c0_i32 = arith.constant 0 : i32
    %c0_i32_0 = arith.constant 0 : i32
    %c0_i32_1 = arith.constant 0 : i32
    return %c0_i32, %c0_i32_0 : i32, i32
  }
  func.func @transform_5(%arg0: i32) -> (i32, i32) {
    %c0_i32 = arith.constant 0 : i32
    %c0_i32_0 = arith.constant 0 : i32
    %c0_i32_1 = arith.constant 0 : i32
    return %c0_i32, %c0_i32_0 : i32, i32
  }
  func.func @transform_6(%arg0: i32) -> (i32, i32) {
    %c0_i32 = arith.constant 0 : i32
    %c0_i32_0 = arith.constant 0 : i32
    %c0_i32_1 = arith.constant 0 : i32
    return %c0_i32, %c0_i32_0 : i32, i32
  }
  func.func @transform_7(%arg0: i32) -> (i32, i32) {
    %c0_i32 = arith.constant 0 : i32
    %c0_i32_0 = arith.constant 0 : i32
    return %arg0, %c0_i32 : i32, i32
  }
}

</mosaic_0001>

<llo_original>
// kernel: tpu_custom_call.1
$region0: #{tpu_custom_call.1}
  #allocation0 [shape = 'u32[]', space=smem, size = 0x4, offset = 0x4, fixed_abs, tag = 'smem constant byte address 0x4 - core index']
  #allocation1 [shape = 'u32[72,128]{1,0:T(1,128)}', space=vmem, size = 0x9000, scoped, tag = 'internal scratch']
  #allocation2 [shape = 'f32[8,512]{1,0:T(8,128)}', space=vmem, size = 0x4000, scoped, tag = 'scratch operand']
  #allocation3 [shape = 'f32[8,256]{1,0:T(8,128)}', space=vmem, size = 0x2000, scoped, tag = 'scratch operand']
  %s0 = inlined_call_operand.hbm [shape: f32[8,128], index: 0, kind: input, shape index: {}]
  %s1 = inlined_call_operand.hbm [shape: f32[128,512], index: 1, kind: input, shape index: {}]
  %s2 = inlined_call_operand.hbm [shape: f32[1,512], index: 2, kind: input, shape index: {}]
  %s3 = inlined_call_operand.hbm [shape: f32[512,256], index: 3, kind: input, shape index: {}]
  %s4 = inlined_call_operand.vmem [shape: f32[1,256], index: 4, kind: input, shape index: {}]
  %s5 = inlined_call_operand.hbm [shape: f32[256,128], index: 5, kind: input, shape index: {}]
  %s6 = inlined_call_operand.vmem [shape: f32[1,128], index: 6, kind: input, shape index: {}]
  %s7 = inlined_call_operand.hbm [shape: f32[8,128], index: 7, kind: output, shape index: {}]
  %s8 = sld [smem:[#allocation0]]
  $region58: #{tpu_custom_call.1} parent=0
    _
  %s10 = ssub.s32 1, %s8
  %s11 = scalar_select 0, %s10, %s8
  $region1: #{tpu_custom_call.1} parent=0
    #allocation4 [shape = 'u8[4096]{0}', space=vmem, size = 0x1000, scoped, tag = 'input window, operand 0, single buffered']
    #allocation5 [shape = 's32[1]{0}', space=sflag, size = 0x4, scoped, tag = 'scoped memory for tpu_custom_call.1']
    #allocation6 [shape = 's32[1]{0}', space=sflag, size = 0x4, scoped, tag = 'scoped memory for tpu_custom_call.1']
    #allocation7 [shape = 'u8[262144]{0}', space=vmem, size = 0x40000, scoped, tag = 'input window, operand 1, single buffered']
    #allocation8 [shape = 's32[1]{0}', space=sflag, size = 0x4, scoped, tag = 'scoped memory for tpu_custom_call.1']
    #allocation9 [shape = 'u8[2048]{0}', space=vmem, size = 0x800, scoped, tag = 'input window, operand 2, single buffered']
    #allocation10 [shape = 'u8[524288]{0}', space=vmem, size = 0x80000, scoped, tag = 'input window, operand 3, single buffered']
    #allocation11 [shape = 's32[1]{0}', space=sflag, size = 0x4, scoped, tag = 'scoped memory for tpu_custom_call.1']
    #allocation12 [shape = 'u8[131072]{0}', space=vmem, size = 0x20000, scoped, tag = 'input window, operand 5, single buffered']
    #allocation13 [shape = 'u8[4096]{0}', space=vmem, size = 0x1000, scoped, tag = 'output window, operand 0, single buffered']
    %12 = vsyncpa [#allocation5], 0
    %13 = vsyncpa [#allocation8], 0
    %14 = vsyncpa [#allocation11], 0
    %15 = vsyncpa [#allocation6], 0
    // Predicated region
    $region2: #{tpu_custom_call.1} parent=1 // pred_check
      _
    $region3: #{tpu_custom_call.1} parent=1 // pred_check_branch
      %17 = sbr.rel (0) target = $region5
    $region4: #{tpu_custom_call.1} parent=1 // pred_region
      %19 = vsyncadd [#allocation5], 0
      %s21 = sshll.u32 %s0, 4
      %s22 = int_to_ptr.hbm [resolvable:$true] %s21
      %s23 = sshll.u32 [#allocation4], 4
      %s24 = int_to_ptr.vmem [resolvable:$true] %s23
      %26 = dma.hbm_to_vmem [thread:$0]  %s22, 128, %s24, [#allocation5]
    $region5: #{tpu_custom_call.1} parent=1 // pred_fallthru
      _
    // Predicated region
    $region6: #{tpu_custom_call.1} parent=1 // pred_check
      _
    $region7: #{tpu_custom_call.1} parent=1 // pred_check_branch
      %28 = sbr.rel (0) target = $region9
    $region8: #{tpu_custom_call.1} parent=1 // pred_region
      %30 = vsyncadd [#allocation8], 0
      %s31 = sshll.u32 %s1, 4
      %s32 = int_to_ptr.hbm [resolvable:$true] %s31
      %s33 = sshll.u32 [#allocation7], 4
      %s34 = int_to_ptr.vmem [resolvable:$true] %s33
      %39 = dma.hbm_to_vmem [thread:$0]  %s32, 8192, %s34, [#allocation8], 512, 512, 32
    $region9: #{tpu_custom_call.1} parent=1 // pred_fallthru
      _
    // Predicated region
    $region10: #{tpu_custom_call.1} parent=1 // pred_check
      _
    $region11: #{tpu_custom_call.1} parent=1 // pred_check_branch
      %41 = sbr.rel (0) target = $region13
    $region12: #{tpu_custom_call.1} parent=1 // pred_region
      %43 = vsyncadd [#allocation8], 0
      %s45 = sshll.u32 %s2, 4
      %s46 = int_to_ptr.hbm [resolvable:$true] %s45
      %s47 = sshll.u32 [#allocation9], 4
      %s48 = int_to_ptr.vmem [resolvable:$true] %s47
      %50 = dma.hbm_to_vmem [thread:$0]  %s46, 64, %s48, [#allocation8]
    $region13: #{tpu_custom_call.1} parent=1 // pred_fallthru
      _
    // Predicated region
    $region14: #{tpu_custom_call.1} parent=1 // pred_check
      _
    $region15: #{tpu_custom_call.1} parent=1 // pred_check_branch
      %52 = sbr.rel (0) target = $region17
    $region16: #{tpu_custom_call.1} parent=1 // pred_region
      %54 = vsyncadd [#allocation11], 0
      %s55 = sshll.u32 %s3, 4
      %s56 = int_to_ptr.hbm [resolvable:$true] %s55
      %s57 = sshll.u32 [#allocation10], 4
      %s58 = int_to_ptr.vmem [resolvable:$true] %s57
      %63 = dma.hbm_to_vmem [thread:$0]  %s56, 16384, %s58, [#allocation11], 256, 256, 16
    $region17: #{tpu_custom_call.1} parent=1 // pred_fallthru
      _
    // Predicated region
    $region18: #{tpu_custom_call.1} parent=1 // pred_check
      _
    $region19: #{tpu_custom_call.1} parent=1 // pred_check_branch
      %65 = sbr.rel (0) target = $region21
    $region20: #{tpu_custom_call.1} parent=1 // pred_region
      _
    $region21: #{tpu_custom_call.1} parent=1 // pred_fallthru
      _
    // Predicated region
    $region22: #{tpu_custom_call.1} parent=1 // pred_check
      _
    $region23: #{tpu_custom_call.1} parent=1 // pred_check_branch
      %67 = sbr.rel (0) target = $region25
    $region24: #{tpu_custom_call.1} parent=1 // pred_region
      %69 = vsyncadd [#allocation11], 0
      %s70 = sshll.u32 %s5, 4
      %s71 = int_to_ptr.hbm [resolvable:$true] %s70
      %s72 = sshll.u32 [#allocation12], 4
      %s73 = int_to_ptr.vmem [resolvable:$true] %s72
      %78 = dma.hbm_to_vmem [thread:$0]  %s71, 4096, %s73, [#allocation11], 128, 128, 8
    $region25: #{tpu_custom_call.1} parent=1 // pred_fallthru
      _
    // Predicated region
    $region26: #{tpu_custom_call.1} parent=1 // pred_check
      _
    $region27: #{tpu_custom_call.1} parent=1 // pred_check_branch
      %80 = sbr.rel (0) target = $region29
    $region28: #{tpu_custom_call.1} parent=1 // pred_region
      _
    $region29: #{tpu_custom_call.1} parent=1 // pred_fallthru
      _
    // Predicated region
    $region30: #{tpu_custom_call.1} parent=1 // pred_check
      _
    $region31: #{tpu_custom_call.1} parent=1 // pred_check_branch
      %82 = sbr.rel (0) target = $region33
    $region32: #{tpu_custom_call.1} parent=1 // pred_region
      %84 = dma.done [#allocation5], 128
    $region33: #{tpu_custom_call.1} parent=1 // pred_fallthru
      _
    // Predicated region
    $region34: #{tpu_custom_call.1} parent=1 // pred_check
      _
    $region35: #{tpu_custom_call.1} parent=1 // pred_check_branch
      %86 = sbr.rel (0) target = $region37
    $region36: #{tpu_custom_call.1} parent=1 // pred_region
      %88 = dma.done [#allocation8], 8192
    $region37: #{tpu_custom_call.1} parent=1 // pred_fallthru
      _
    // Predicated region
    $region38: #{tpu_custom_call.1} parent=1 // pred_check
      _
    $region39: #{tpu_custom_call.1} parent=1 // pred_check_branch
      %90 = sbr.rel (0) target = $region41
    $region40: #{tpu_custom_call.1} parent=1 // pred_region
      %92 = dma.done [#allocation8], 64
    $region41: #{tpu_custom_call.1} parent=1 // pred_fallthru
      _
    // Predicated region
    $region42: #{tpu_custom_call.1} parent=1 // pred_check
      _
    $region43: #{tpu_custom_call.1} parent=1 // pred_check_branch
      %94 = sbr.rel (0) target = $region45
    $region44: #{tpu_custom_call.1} parent=1 // pred_region
      %96 = dma.done [#allocation11], 16384
    $region45: #{tpu_custom_call.1} parent=1 // pred_fallthru
      _
    // Predicated region
    $region46: #{tpu_custom_call.1} parent=1 // pred_check
      _
    $region47: #{tpu_custom_call.1} parent=1 // pred_check_branch
      %98 = sbr.rel (0) target = $region49
    $region48: #{tpu_custom_call.1} parent=1 // pred_region
      %100 = dma.done [#allocation11], 4096
    $region49: #{tpu_custom_call.1} parent=1 // pred_fallthru
      _
    %v101 = vld [vmem:[#allocation4] sm:$0xff]
    %v102 = vld [vmem:[#allocation7] sm:$0xff]
    %v103 = vld [vmem:[#allocation7 + $0x8] sm:$0xff]
    %v104 = vld [vmem:[#allocation7 + $0x10] sm:$0xff]
    %v105 = vld [vmem:[#allocation7 + $0x18] sm:$0xff]
    %v106 = vld [vmem:[#allocation7 + $0x20] sm:$0xff]
    %v107 = vld [vmem:[#allocation7 + $0x28] sm:$0xff]
    %v108 = vld [vmem:[#allocation7 + $0x30] sm:$0xff]
    %v109 = vld [vmem:[#allocation7 + $0x38] sm:$0xff]
    %v110 = vld [vmem:[#allocation7 + $0x40] sm:$0xff]
    %v111 = vld [vmem:[#allocation7 + $0x48] sm:$0xff]
    %v112 = vld [vmem:[#allocation7 + $0x50] sm:$0xff]
    %v113 = vld [vmem:[#allocation7 + $0x58] sm:$0xff]
    %v114 = vld [vmem:[#allocation7 + $0x60] sm:$0xff]
    %v115 = vld [vmem:[#allocation7 + $0x68] sm:$0xff]
    %v116 = vld [vmem:[#allocation7 + $0x70] sm:$0xff]
    %v117 = vld [vmem:[#allocation7 + $0x78] sm:$0xff]
    %v118 = vld [vmem:[#allocation7 + $0x80] sm:$0xff]
    %v119 = vld [vmem:[#allocation7 + $0x88] sm:$0xff]
    %v120 = vld [vmem:[#allocation7 + $0x90] sm:$0xff]
    %v121 = vld [vmem:[#allocation7 + $0x98] sm:$0xff]
    %v122 = vld [vmem:[#allocation7 + $0xa0] sm:$0xff]
    %v123 = vld [vmem:[#allocation7 + $0xa8] sm:$0xff]
    %v124 = vld [vmem:[#allocation7 + $0xb0] sm:$0xff]
    %v125 = vld [vmem:[#allocation7 + $0xb8] sm:$0xff]
    %v126 = vld [vmem:[#allocation7 + $0xc0] sm:$0xff]
    %v127 = vld [vmem:[#allocation7 + $0xc8] sm:$0xff]
    %v128 = vld [vmem:[#allocation7 + $0xd0] sm:$0xff]
    %v129 = vld [vmem:[#allocation7 + $0xd8] sm:$0xff]
    %v130 = vld [vmem:[#allocation7 + $0xe0] sm:$0xff]
    %v131 = vld [vmem:[#allocation7 + $0xe8] sm:$0xff]
    %v132 = vld [vmem:[#allocation7 + $0xf0] sm:$0xff]
    %v133 = vld [vmem:[#allocation7 + $0xf8] sm:$0xff]
    %v134 = vld [vmem:[#allocation7 + $0x100] sm:$0xff]
    %v135 = vld [vmem:[#allocation7 + $0x108] sm:$0xff]
    %v136 = vld [vmem:[#allocation7 + $0x110] sm:$0xff]
    %v137 = vld [vmem:[#allocation7 + $0x118] sm:$0xff]
    %v138 = vld [vmem:[#allocation7 + $0x120] sm:$0xff]
    %v139 = vld [vmem:[#allocation7 + $0x128] sm:$0xff]
    %v140 = vld [vmem:[#allocation7 + $0x130] sm:$0xff]
    %v141 = vld [vmem:[#allocation7 + $0x138] sm:$0xff]
    %v142 = vld [vmem:[#allocation7 + $0x140] sm:$0xff]
    %v143 = vld [vmem:[#allocation7 + $0x148] sm:$0xff]
    %v144 = vld [vmem:[#allocation7 + $0x150] sm:$0xff]
    %v145 = vld [vmem:[#allocation7 + $0x158] sm:$0xff]
    %v146 = vld [vmem:[#allocation7 + $0x160] sm:$0xff]
    %v147 = vld [vmem:[#allocation7 + $0x168] sm:$0xff]
    %v148 = vld [vmem:[#allocation7 + $0x170] sm:$0xff]
    %v149 = vld [vmem:[#allocation7 + $0x178] sm:$0xff]
    %v150 = vld [vmem:[#allocation7 + $0x180] sm:$0xff]
    %v151 = vld [vmem:[#allocation7 + $0x188] sm:$0xff]
    %v152 = vld [vmem:[#allocation7 + $0x190] sm:$0xff]
    %v153 = vld [vmem:[#allocation7 + $0x198] sm:$0xff]
    %v154 = vld [vmem:[#allocation7 + $0x1a0] sm:$0xff]
    %v155 = vld [vmem:[#allocation7 + $0x1a8] sm:$0xff]
    %v156 = vld [vmem:[#allocation7 + $0x1b0] sm:$0xff]
    %v157 = vld [vmem:[#allocation7 + $0x1b8] sm:$0xff]
    %v158 = vld [vmem:[#allocation7 + $0x1c0] sm:$0xff]
    %v159 = vld [vmem:[#allocation7 + $0x1c8] sm:$0xff]
    %v160 = vld [vmem:[#allocation7 + $0x1d0] sm:$0xff]
    %v161 = vld [vmem:[#allocation7 + $0x1d8] sm:$0xff]
    %v162 = vld [vmem:[#allocation7 + $0x1e0] sm:$0xff]
    %v163 = vld [vmem:[#allocation7 + $0x1e8] sm:$0xff]
    %v164 = vld [vmem:[#allocation7 + $0x1f0] sm:$0xff]
    %v165 = vld [vmem:[#allocation7 + $0x1f8] sm:$0xff]
    %v166 = vld [vmem:[#allocation9] sm:$0xf]
    %v168 = vperm.slane %v166, 0
    %v169 = vperm.slane %v166, 1
    %v170 = vperm.slane %v166, 2
    %v171 = vperm.slane %v166, 3
    %176 = vmatpush.msra.mxu0 %v162
    %177 = vmatpush.msra.mxu0 %v158
    %178 = vmatpush.msra.mxu0 %v154
    %179 = vmatpush.msra.mxu0 %v150
    %180 = vmatpush.msra.mxu0 %v146
    %181 = vmatpush.msra.mxu0 %v142
    %182 = vmatpush.msra.mxu0 %v138
    %183 = vmatpush.msra.mxu0 %v134
    %184 = vmatpush.msra.mxu0 %v130
    %185 = vmatpush.msra.mxu0 %v126
    %186 = vmatpush.msra.mxu0 %v122
    %187 = vmatpush.msra.mxu0 %v118
    %188 = vmatpush.msra.mxu0 %v114
    %189 = vmatpush.msra.mxu0 %v110
    %190 = vmatpush.msra.mxu0 %v106
    %191 = vmatpush.msra.mxu0 %v102
    %192 = vmatmul.f32.gmra.mxu0 %v101
    %v193 = vpop.f32.mrf.mxu0
    %v194 = vadd.f32 %v168, %v193
    %195 = vdwg.mxu0
    %196 = vmatpush.msra.mxu0 %v163
    %197 = vmatpush.msra.mxu0 %v159
    %198 = vmatpush.msra.mxu0 %v155
    %199 = vmatpush.msra.mxu0 %v151
    %200 = vmatpush.msra.mxu0 %v147
    %201 = vmatpush.msra.mxu0 %v143
    %202 = vmatpush.msra.mxu0 %v139
    %203 = vmatpush.msra.mxu0 %v135
    %204 = vmatpush.msra.mxu0 %v131
    %205 = vmatpush.msra.mxu0 %v127
    %206 = vmatpush.msra.mxu0 %v123
    %207 = vmatpush.msra.mxu0 %v119
    %208 = vmatpush.msra.mxu0 %v115
    %209 = vmatpush.msra.mxu0 %v111
    %210 = vmatpush.msra.mxu0 %v107
    %211 = vmatpush.msra.mxu0 %v103
    %212 = vmatmul.f32.gmra.mxu0 %v101
    %v213 = vpop.f32.mrf.mxu0
    %v214 = vadd.f32 %v169, %v213
    %215 = vdwg.mxu0
    %216 = vmatpush.msra.mxu0 %v164
    %217 = vmatpush.msra.mxu0 %v160
    %218 = vmatpush.msra.mxu0 %v156
    %219 = vmatpush.msra.mxu0 %v152
    %220 = vmatpush.msra.mxu0 %v148
    %221 = vmatpush.msra.mxu0 %v144
    %222 = vmatpush.msra.mxu0 %v140
    %223 = vmatpush.msra.mxu0 %v136
    %224 = vmatpush.msra.mxu0 %v132
    %225 = vmatpush.msra.mxu0 %v128
    %226 = vmatpush.msra.mxu0 %v124
    %227 = vmatpush.msra.mxu0 %v120
    %228 = vmatpush.msra.mxu0 %v116
    %229 = vmatpush.msra.mxu0 %v112
    %230 = vmatpush.msra.mxu0 %v108
    %231 = vmatpush.msra.mxu0 %v104
    %232 = vmatmul.f32.gmra.mxu0 %v101
    %v233 = vpop.f32.mrf.mxu0
    %v234 = vadd.f32 %v170, %v233
    %235 = vdwg.mxu0
    %236 = vmatpush.msra.mxu0 %v165
    %237 = vmatpush.msra.mxu0 %v161
    %238 = vmatpush.msra.mxu0 %v157
    %239 = vmatpush.msra.mxu0 %v153
    %240 = vmatpush.msra.mxu0 %v149
    %241 = vmatpush.msra.mxu0 %v145
    %242 = vmatpush.msra.mxu0 %v141
    %243 = vmatpush.msra.mxu0 %v137
    %244 = vmatpush.msra.mxu0 %v133
    %245 = vmatpush.msra.mxu0 %v129
    %246 = vmatpush.msra.mxu0 %v125
    %247 = vmatpush.msra.mxu0 %v121
    %248 = vmatpush.msra.mxu0 %v117
    %249 = vmatpush.msra.mxu0 %v113
    %250 = vmatpush.msra.mxu0 %v109
    %251 = vmatpush.msra.mxu0 %v105
    %252 = vmatmul.f32.gmra.mxu0 %v101
    %v253 = vpop.f32.mrf.mxu0
    %v254 = vadd.f32 %v171, %v253
    %255 = vdwg.mxu0
    %v256 = vmax.f32 %v194, 0.0
    %v257 = vmax.f32 %v214, 0.0
    %v258 = vmax.f32 %v234, 0.0
    %v259 = vmax.f32 %v254, 0.0
    %260 = vst [vmem:[#allocation2] sm:$0xff] %v256
    %261 = vst [vmem:[#allocation2 + $0x8] sm:$0xff] %v257
    %262 = vst [vmem:[#allocation2 + $0x10] sm:$0xff] %v258
    %263 = vst [vmem:[#allocation2 + $0x18] sm:$0xff] %v259
    %v264 = vld [vmem:[#allocation2] sm:$0xff]
    %v265 = vld [vmem:[#allocation2 + $0x8] sm:$0xff]
    %v266 = vld [vmem:[#allocation2 + $0x10] sm:$0xff]
    %v267 = vld [vmem:[#allocation2 + $0x18] sm:$0xff]
    %v268 = vld [vmem:[#allocation10] sm:$0xff]
    %v269 = vld [vmem:[#allocation10 + $0x8] sm:$0xff]
    %v270 = vld [vmem:[#allocation10 + $0x10] sm:$0xff]
    %v271 = vld [vmem:[#allocation10 + $0x18] sm:$0xff]
    %v272 = vld [vmem:[#allocation10 + $0x20] sm:$0xff]
    %v273 = vld [vmem:[#allocation10 + $0x28] sm:$0xff]
    %v274 = vld [vmem:[#allocation10 + $0x30] sm:$0xff]
    %v275 = vld [vmem:[#allocation10 + $0x38] sm:$0xff]
    %v276 = vld [vmem:[#allocation10 + $0x40] sm:$0xff]
    %v277 = vld [vmem:[#allocation10 + $0x48] sm:$0xff]
    %v278 = vld [vmem:[#allocation10 + $0x50] sm:$0xff]
    %v279 = vld [vmem:[#allocation10 + $0x58] sm:$0xff]
    %v280 = vld [vmem:[#allocation10 + $0x60] sm:$0xff]
    %v281 = vld [vmem:[#allocation10 + $0x68] sm:$0xff]
    %v282 = vld [vmem:[#allocation10 + $0x70] sm:$0xff]
    %v283 = vld [vmem:[#allocation10 + $0x78] sm:$0xff]
    %v284 = vld [vmem:[#allocation10 + $0x80] sm:$0xff]
    %v285 = vld [vmem:[#allocation10 + $0x88] sm:$0xff]
    %v286 = vld [vmem:[#allocation10 + $0x90] sm:$0xff]
    %v287 = vld [vmem:[#allocation10 + $0x98] sm:$0xff]
    %v288 = vld [vmem:[#allocation10 + $0xa0] sm:$0xff]
    %v289 = vld [vmem:[#allocation10 + $0xa8] sm:$0xff]
    %v290 = vld [vmem:[#allocation10 + $0xb0] sm:$0xff]
    %v291 = vld [vmem:[#allocation10 + $0xb8] sm:$0xff]
    %v292 = vld [vmem:[#allocation10 + $0xc0] sm:$0xff]
    %v293 = vld [vmem:[#allocation10 + $0xc8] sm:$0xff]
    %v294 = vld [vmem:[#allocation10 + $0xd0] sm:$0xff]
    %v295 = vld [vmem:[#allocation10 + $0xd8] sm:$0xff]
    %v296 = vld [vmem:[#allocation10 + $0xe0] sm:$0xff]
    %v297 = vld [vmem:[#allocation10 + $0xe8] sm:$0xff]
    %v298 = vld [vmem:[#allocation10 + $0xf0] sm:$0xff]
    %v299 = vld [vmem:[#allocation10 + $0xf8] sm:$0xff]
    %v300 = vld [vmem:[#allocation10 + $0x100] sm:$0xff]
    %v301 = vld [vmem:[#allocation10 + $0x108] sm:$0xff]
    %v302 = vld [vmem:[#allocation10 + $0x110] sm:$0xff]
    %v303 = vld [vmem:[#allocation10 + $0x118] sm:$0xff]
    %v304 = vld [vmem:[#allocation10 + $0x120] sm:$0xff]
    %v305 = vld [vmem:[#allocation10 + $0x128] sm:$0xff]
    %v306 = vld [vmem:[#allocation10 + $0x130] sm:$0xff]
    %v307 = vld [vmem:[#allocation10 + $0x138] sm:$0xff]
    %v308 = vld [vmem:[#allocation10 + $0x140] sm:$0xff]
    %v309 = vld [vmem:[#allocation10 + $0x148] sm:$0xff]
    %v310 = vld [vmem:[#allocation10 + $0x150] sm:$0xff]
    %v311 = vld [vmem:[#allocation10 + $0x158] sm:$0xff]
    %v312 = vld [vmem:[#allocation10 + $0x160] sm:$0xff]
    %v313 = vld [vmem:[#allocation10 + $0x168] sm:$0xff]
    %v314 = vld [vmem:[#allocation10 + $0x170] sm:$0xff]
    %v315 = vld [vmem:[#allocation10 + $0x178] sm:$0xff]
    %v316 = vld [vmem:[#allocation10 + $0x180] sm:$0xff]
    %v317 = vld [vmem:[#allocation10 + $0x188] sm:$0xff]
    %v318 = vld [vmem:[#allocation10 + $0x190] sm:$0xff]
    %v319 = vld [vmem:[#allocation10 + $0x198] sm:$0xff]
    %v320 = vld [vmem:[#allocation10 + $0x1a0] sm:$0xff]
    %v321 = vld [vmem:[#allocation10 + $0x1a8] sm:$0xff]
    %v322 = vld [vmem:[#allocation10 + $0x1b0] sm:$0xff]
    %v323 = vld [vmem:[#allocation10 + $0x1b8] sm:$0xff]
    %v324 = vld [vmem:[#allocation10 + $0x1c0] sm:$0xff]
    %v325 = vld [vmem:[#allocation10 + $0x1c8] sm:$0xff]
    %v326 = vld [vmem:[#allocation10 + $0x1d0] sm:$0xff]
    %v327 = vld [vmem:[#allocation10 + $0x1d8] sm:$0xff]
    %v328 = vld [vmem:[#allocation10 + $0x1e0] sm:$0xff]
    %v329 = vld [vmem:[#allocation10 + $0x1e8] sm:$0xff]
    %v330 = vld [vmem:[#allocation10 + $0x1f0] sm:$0xff]
    %v331 = vld [vmem:[#allocation10 + $0x1f8] sm:$0xff]
    %v332 = vld [vmem:[#allocation10 + $0x200] sm:$0xff]
    %v333 = vld [vmem:[#allocation10 + $0x208] sm:$0xff]
    %v334 = vld [vmem:[#allocation10 + $0x210] sm:$0xff]
    %v335 = vld [vmem:[#allocation10 + $0x218] sm:$0xff]
    %v336 = vld [vmem:[#allocation10 + $0x220] sm:$0xff]
    %v337 = vld [vmem:[#allocation10 + $0x228] sm:$0xff]
    %v338 = vld [vmem:[#allocation10 + $0x230] sm:$0xff]
    %v339 = vld [vmem:[#allocation10 + $0x238] sm:$0xff]
    %v340 = vld [vmem:[#allocation10 + $0x240] sm:$0xff]
    %v341 = vld [vmem:[#allocation10 + $0x248] sm:$0xff]
    %v342 = vld [vmem:[#allocation10 + $0x250] sm:$0xff]
    %v343 = vld [vmem:[#allocation10 + $0x258] sm:$0xff]
    %v344 = vld [vmem:[#allocation10 + $0x260] sm:$0xff]
    %v345 = vld [vmem:[#allocation10 + $0x268] sm:$0xff]
    %v346 = vld [vmem:[#allocation10 + $0x270] sm:$0xff]
    %v347 = vld [vmem:[#allocation10 + $0x278] sm:$0xff]
    %v348 = vld [vmem:[#allocation10 + $0x280] sm:$0xff]
    %v349 = vld [vmem:[#allocation10 + $0x288] sm:$0xff]
    %v350 = vld [vmem:[#allocation10 + $0x290] sm:$0xff]
    %v351 = vld [vmem:[#allocation10 + $0x298] sm:$0xff]
    %v352 = vld [vmem:[#allocation10 + $0x2a0] sm:$0xff]
    %v353 = vld [vmem:[#allocation10 + $0x2a8] sm:$0xff]
    %v354 = vld [vmem:[#allocation10 + $0x2b0] sm:$0xff]
    %v355 = vld [vmem:[#allocation10 + $0x2b8] sm:$0xff]
    %v356 = vld [vmem:[#allocation10 + $0x2c0] sm:$0xff]
    %v357 = vld [vmem:[#allocation10 + $0x2c8] sm:$0xff]
    %v358 = vld [vmem:[#allocation10 + $0x2d0] sm:$0xff]
    %v359 = vld [vmem:[#allocation10 + $0x2d8] sm:$0xff]
    %v360 = vld [vmem:[#allocation10 + $0x2e0] sm:$0xff]
    %v361 = vld [vmem:[#allocation10 + $0x2e8] sm:$0xff]
    %v362 = vld [vmem:[#allocation10 + $0x2f0] sm:$0xff]
    %v363 = vld [vmem:[#allocation10 + $0x2f8] sm:$0xff]
    %v364 = vld [vmem:[#allocation10 + $0x300] sm:$0xff]
    %v365 = vld [vmem:[#allocation10 + $0x308] sm:$0xff]
    %v366 = vld [vmem:[#allocation10 + $0x310] sm:$0xff]
    %v367 = vld [vmem:[#allocation10 + $0x318] sm:$0xff]
    %v368 = vld [vmem:[#allocation10 + $0x320] sm:$0xff]
    %v369 = vld [vmem:[#allocation10 + $0x328] sm:$0xff]
    %v370 = vld [vmem:[#allocation10 + $0x330] sm:$0xff]
    %v371 = vld [vmem:[#allocation10 + $0x338] sm:$0xff]
    %v372 = vld [vmem:[#allocation10 + $0x340] sm:$0xff]
    %v373 = vld [vmem:[#allocation10 + $0x348] sm:$0xff]
    %v374 = vld [vmem:[#allocation10 + $0x350] sm:$0xff]
    %v375 = vld [vmem:[#allocation10 + $0x358] sm:$0xff]
    %v376 = vld [vmem:[#allocation10 + $0x360] sm:$0xff]
    %v377 = vld [vmem:[#allocation10 + $0x368] sm:$0xff]
    %v378 = vld [vmem:[#allocation10 + $0x370] sm:$0xff]
    %v379 = vld [vmem:[#allocation10 + $0x378] sm:$0xff]
    %v380 = vld [vmem:[#allocation10 + $0x380] sm:$0xff]
    %v381 = vld [vmem:[#allocation10 + $0x388] sm:$0xff]
    %v382 = vld [vmem:[#allocation10 + $0x390] sm:$0xff]
    %v383 = vld [vmem:[#allocation10 + $0x398] sm:$0xff]
    %v384 = vld [vmem:[#allocation10 + $0x3a0] sm:$0xff]
    %v385 = vld [vmem:[#allocation10 + $0x3a8] sm:$0xff]
    %v386 = vld [vmem:[#allocation10 + $0x3b0] sm:$0xff]
    %v387 = vld [vmem:[#allocation10 + $0x3b8] sm:$0xff]
    %v388 = vld [vmem:[#allocation10 + $0x3c0] sm:$0xff]
    %v389 = vld [vmem:[#allocation10 + $0x3c8] sm:$0xff]
    %v390 = vld [vmem:[#allocation10 + $0x3d0] sm:$0xff]
    %v391 = vld [vmem:[#allocation10 + $0x3d8] sm:$0xff]
    %v392 = vld [vmem:[#allocation10 + $0x3e0] sm:$0xff]
    %v393 = vld [vmem:[#allocation10 + $0x3e8] sm:$0xff]
    %v394 = vld [vmem:[#allocation10 + $0x3f0] sm:$0xff]
    %v395 = vld [vmem:[#allocation10 + $0x3f8] sm:$0xff]
    %v396 = vld [vmem:[%s4] sm:$0x3]
    %v398 = vperm.slane %v396, 0
    %v399 = vperm.slane %v396, 1
    %402 = vmatpush.msra.mxu0 %v298
    %403 = vmatpush.msra.mxu0 %v296
    %404 = vmatpush.msra.mxu0 %v294
    %405 = vmatpush.msra.mxu0 %v292
    %406 = vmatpush.msra.mxu0 %v290
    %407 = vmatpush.msra.mxu0 %v288
    %408 = vmatpush.msra.mxu0 %v286
    %409 = vmatpush.msra.mxu0 %v284
    %410 = vmatpush.msra.mxu0 %v282
    %411 = vmatpush.msra.mxu0 %v280
    %412 = vmatpush.msra.mxu0 %v278
    %413 = vmatpush.msra.mxu0 %v276
    %414 = vmatpush.msra.mxu0 %v274
    %415 = vmatpush.msra.mxu0 %v272
    %416 = vmatpush.msra.mxu0 %v270
    %417 = vmatpush.msra.mxu0 %v268
    %418 = vmatmul.f32.gmra.mxu0 %v264
    %v419 = vpop.f32.mrf.mxu0
    %v420 = vadd.f32 %v398, %v419
    %421 = vdwg.mxu0
    %422 = vmatpush.msra.mxu0 %v330
    %423 = vmatpush.msra.mxu0 %v328
    %424 = vmatpush.msra.mxu0 %v326
    %425 = vmatpush.msra.mxu0 %v324
    %426 = vmatpush.msra.mxu0 %v322
    %427 = vmatpush.msra.mxu0 %v320
    %428 = vmatpush.msra.mxu0 %v318
    %429 = vmatpush.msra.mxu0 %v316
    %430 = vmatpush.msra.mxu0 %v314
    %431 = vmatpush.msra.mxu0 %v312
    %432 = vmatpush.msra.mxu0 %v310
    %433 = vmatpush.msra.mxu0 %v308
    %434 = vmatpush.msra.mxu0 %v306
    %435 = vmatpush.msra.mxu0 %v304
    %436 = vmatpush.msra.mxu0 %v302
    %437 = vmatpush.msra.mxu0 %v300
    %438 = vmatmul.f32.gmra.mxu0 %v265
    %v439 = vpop.f32.mrf.mxu0
    %v440 = vadd.f32 %v420, %v439
    %441 = vdwg.mxu0
    %442 = vmatpush.msra.mxu0 %v362
    %443 = vmatpush.msra.mxu0 %v360
    %444 = vmatpush.msra.mxu0 %v358
    %445 = vmatpush.msra.mxu0 %v356
    %446 = vmatpush.msra.mxu0 %v354
    %447 = vmatpush.msra.mxu0 %v352
    %448 = vmatpush.msra.mxu0 %v350
    %449 = vmatpush.msra.mxu0 %v348
    %450 = vmatpush.msra.mxu0 %v346
    %451 = vmatpush.msra.mxu0 %v344
    %452 = vmatpush.msra.mxu0 %v342
    %453 = vmatpush.msra.mxu0 %v340
    %454 = vmatpush.msra.mxu0 %v338
    %455 = vmatpush.msra.mxu0 %v336
    %456 = vmatpush.msra.mxu0 %v334
    %457 = vmatpush.msra.mxu0 %v332
    %458 = vmatmul.f32.gmra.mxu0 %v266
    %v459 = vpop.f32.mrf.mxu0
    %v460 = vadd.f32 %v440, %v459
    %461 = vdwg.mxu0
    %462 = vmatpush.msra.mxu0 %v394
    %463 = vmatpush.msra.mxu0 %v392
    %464 = vmatpush.msra.mxu0 %v390
    %465 = vmatpush.msra.mxu0 %v388
    %466 = vmatpush.msra.mxu0 %v386
    %467 = vmatpush.msra.mxu0 %v384
    %468 = vmatpush.msra.mxu0 %v382
    %469 = vmatpush.msra.mxu0 %v380
    %470 = vmatpush.msra.mxu0 %v378
    %471 = vmatpush.msra.mxu0 %v376
    %472 = vmatpush.msra.mxu0 %v374
    %473 = vmatpush.msra.mxu0 %v372
    %474 = vmatpush.msra.mxu0 %v370
    %475 = vmatpush.msra.mxu0 %v368
    %476 = vmatpush.msra.mxu0 %v366
    %477 = vmatpush.msra.mxu0 %v364
    %478 = vmatmul.f32.gmra.mxu0 %v267
    %v479 = vpop.f32.mrf.mxu0
    %v480 = vadd.f32 %v460, %v479
    %481 = vdwg.mxu0
    %482 = vmatpush.msra.mxu0 %v299
    %483 = vmatpush.msra.mxu0 %v297
    %484 = vmatpush.msra.mxu0 %v295
    %485 = vmatpush.msra.mxu0 %v293
    %486 = vmatpush.msra.mxu0 %v291
    %487 = vmatpush.msra.mxu0 %v289
    %488 = vmatpush.msra.mxu0 %v287
    %489 = vmatpush.msra.mxu0 %v285
    %490 = vmatpush.msra.mxu0 %v283
    %491 = vmatpush.msra.mxu0 %v281
    %492 = vmatpush.msra.mxu0 %v279
    %493 = vmatpush.msra.mxu0 %v277
    %494 = vmatpush.msra.mxu0 %v275
    %495 = vmatpush.msra.mxu0 %v273
    %496 = vmatpush.msra.mxu0 %v271
    %497 = vmatpush.msra.mxu0 %v269
    %498 = vmatmul.f32.gmra.mxu0 %v264
    %v499 = vpop.f32.mrf.mxu0
    %v500 = vadd.f32 %v399, %v499
    %501 = vdwg.mxu0
    %502 = vmatpush.msra.mxu0 %v331
    %503 = vmatpush.msra.mxu0 %v329
    %504 = vmatpush.msra.mxu0 %v327
    %505 = vmatpush.msra.mxu0 %v325
    %506 = vmatpush.msra.mxu0 %v323
    %507 = vmatpush.msra.mxu0 %v321
    %508 = vmatpush.msra.mxu0 %v319
    %509 = vmatpush.msra.mxu0 %v317
    %510 = vmatpush.msra.mxu0 %v315
    %511 = vmatpush.msra.mxu0 %v313
    %512 = vmatpush.msra.mxu0 %v311
    %513 = vmatpush.msra.mxu0 %v309
    %514 = vmatpush.msra.mxu0 %v307
    %515 = vmatpush.msra.mxu0 %v305
    %516 = vmatpush.msra.mxu0 %v303
    %517 = vmatpush.msra.mxu0 %v301
    %518 = vmatmul.f32.gmra.mxu0 %v265
    %v519 = vpop.f32.mrf.mxu0
    %v520 = vadd.f32 %v500, %v519
    %521 = vdwg.mxu0
    %522 = vmatpush.msra.mxu0 %v363
    %523 = vmatpush.msra.mxu0 %v361
    %524 = vmatpush.msra.mxu0 %v359
    %525 = vmatpush.msra.mxu0 %v357
    %526 = vmatpush.msra.mxu0 %v355
    %527 = vmatpush.msra.mxu0 %v353
    %528 = vmatpush.msra.mxu0 %v351
    %529 = vmatpush.msra.mxu0 %v349
    %530 = vmatpush.msra.mxu0 %v347
    %531 = vmatpush.msra.mxu0 %v345
    %532 = vmatpush.msra.mxu0 %v343
    %533 = vmatpush.msra.mxu0 %v341
    %534 = vmatpush.msra.mxu0 %v339
    %535 = vmatpush.msra.mxu0 %v337
    %536 = vmatpush.msra.mxu0 %v335
    %537 = vmatpush.msra.mxu0 %v333
    %538 = vmatmul.f32.gmra.mxu0 %v266
    %v539 = vpop.f32.mrf.mxu0
    %v540 = vadd.f32 %v520, %v539
    %541 = vdwg.mxu0
    %542 = vmatpush.msra.mxu0 %v395
    %543 = vmatpush.msra.mxu0 %v393
    %544 = vmatpush.msra.mxu0 %v391
    %545 = vmatpush.msra.mxu0 %v389
    %546 = vmatpush.msra.mxu0 %v387
    %547 = vmatpush.msra.mxu0 %v385
    %548 = vmatpush.msra.mxu0 %v383
    %549 = vmatpush.msra.mxu0 %v381
    %550 = vmatpush.msra.mxu0 %v379
    %551 = vmatpush.msra.mxu0 %v377
    %552 = vmatpush.msra.mxu0 %v375
    %553 = vmatpush.msra.mxu0 %v373
    %554 = vmatpush.msra.mxu0 %v371
    %555 = vmatpush.msra.mxu0 %v369
    %556 = vmatpush.msra.mxu0 %v367
    %557 = vmatpush.msra.mxu0 %v365
    %558 = vmatmul.f32.gmra.mxu0 %v267
    %v559 = vpop.f32.mrf.mxu0
    %v560 = vadd.f32 %v540, %v559
    %561 = vdwg.mxu0
    %v562 = vmax.f32 %v480, 0.0
    %v563 = vmax.f32 %v560, 0.0
    %564 = vst [vmem:[#allocation3] sm:$0xff] %v562
    %565 = vst [vmem:[#allocation3 + $0x8] sm:$0xff] %v563
    %v566 = vld [vmem:[#allocation3] sm:$0xff]
    %v567 = vld [vmem:[#allocation3 + $0x8] sm:$0xff]
    %v568 = vld [vmem:[#allocation12] sm:$0xff]
    %v569 = vld [vmem:[#allocation12 + $0x8] sm:$0xff]
    %v570 = vld [vmem:[#allocation12 + $0x10] sm:$0xff]
    %v571 = vld [vmem:[#allocation12 + $0x18] sm:$0xff]
    %v572 = vld [vmem:[#allocation12 + $0x20] sm:$0xff]
    %v573 = vld [vmem:[#allocation12 + $0x28] sm:$0xff]
    %v574 = vld [vmem:[#allocation12 + $0x30] sm:$0xff]
    %v575 = vld [vmem:[#allocation12 + $0x38] sm:$0xff]
    %v576 = vld [vmem:[#allocation12 + $0x40] sm:$0xff]
    %v577 = vld [vmem:[#allocation12 + $0x48] sm:$0xff]
    %v578 = vld [vmem:[#allocation12 + $0x50] sm:$0xff]
    %v579 = vld [vmem:[#allocation12 + $0x58] sm:$0xff]
    %v580 = vld [vmem:[#allocation12 + $0x60] sm:$0xff]
    %v581 = vld [vmem:[#allocation12 + $0x68] sm:$0xff]
    %v582 = vld [vmem:[#allocation12 + $0x70] sm:$0xff]
    %v583 = vld [vmem:[#allocation12 + $0x78] sm:$0xff]
    %v584 = vld [vmem:[#allocation12 + $0x80] sm:$0xff]
    %v585 = vld [vmem:[#allocation12 + $0x88] sm:$0xff]
    %v586 = vld [vmem:[#allocation12 + $0x90] sm:$0xff]
    %v587 = vld [vmem:[#allocation12 + $0x98] sm:$0xff]
    %v588 = vld [vmem:[#allocation12 + $0xa0] sm:$0xff]
    %v589 = vld [vmem:[#allocation12 + $0xa8] sm:$0xff]
    %v590 = vld [vmem:[#allocation12 + $0xb0] sm:$0xff]
    %v591 = vld [vmem:[#allocation12 + $0xb8] sm:$0xff]
    %v592 = vld [vmem:[#allocation12 + $0xc0] sm:$0xff]
    %v593 = vld [vmem:[#allocation12 + $0xc8] sm:$0xff]
    %v594 = vld [vmem:[#allocation12 + $0xd0] sm:$0xff]
    %v595 = vld [vmem:[#allocation12 + $0xd8] sm:$0xff]
    %v596 = vld [vmem:[#allocation12 + $0xe0] sm:$0xff]
    %v597 = vld [vmem:[#allocation12 + $0xe8] sm:$0xff]
    %v598 = vld [vmem:[#allocation12 + $0xf0] sm:$0xff]
    %v599 = vld [vmem:[#allocation12 + $0xf8] sm:$0xff]
    %v600 = vld [vmem:[%s6] sm:$0x1]
    %v602 = vperm.slane %v600, 0
    %604 = vmatpush.msra.mxu0 %v583
    %605 = vmatpush.msra.mxu0 %v582
    %606 = vmatpush.msra.mxu0 %v581
    %607 = vmatpush.msra.mxu0 %v580
    %608 = vmatpush.msra.mxu0 %v579
    %609 = vmatpush.msra.mxu0 %v578
    %610 = vmatpush.msra.mxu0 %v577
    %611 = vmatpush.msra.mxu0 %v576
    %612 = vmatpush.msra.mxu0 %v575
    %613 = vmatpush.msra.mxu0 %v574
    %614 = vmatpush.msra.mxu0 %v573
    %615 = vmatpush.msra.mxu0 %v572
    %616 = vmatpush.msra.mxu0 %v571
    %617 = vmatpush.msra.mxu0 %v570
    %618 = vmatpush.msra.mxu0 %v569
    %619 = vmatpush.msra.mxu0 %v568
    %620 = vmatmul.f32.gmra.mxu0 %v566
    %v621 = vpop.f32.mrf.mxu0
    %v622 = vadd.f32 %v602, %v621
    %623 = vdwg.mxu0
    %624 = vmatpush.msra.mxu0 %v599
    %625 = vmatpush.msra.mxu0 %v598
    %626 = vmatpush.msra.mxu0 %v597
    %627 = vmatpush.msra.mxu0 %v596
    %628 = vmatpush.msra.mxu0 %v595
    %629 = vmatpush.msra.mxu0 %v594
    %630 = vmatpush.msra.mxu0 %v593
    %631 = vmatpush.msra.mxu0 %v592
    %632 = vmatpush.msra.mxu0 %v591
    %633 = vmatpush.msra.mxu0 %v590
    %634 = vmatpush.msra.mxu0 %v589
    %635 = vmatpush.msra.mxu0 %v588
    %636 = vmatpush.msra.mxu0 %v587
    %637 = vmatpush.msra.mxu0 %v586
    %638 = vmatpush.msra.mxu0 %v585
    %639 = vmatpush.msra.mxu0 %v584
    %640 = vmatmul.f32.gmra.mxu0 %v567
    %v641 = vpop.f32.mrf.mxu0
    %v642 = vadd.f32 %v622, %v641
    %643 = vdwg.mxu0
    %v644 = vtanh.pop %v642
    %645 = vst [vmem:[#allocation13] sm:$0xff] %v644
    // Predicated region
    $region50: #{tpu_custom_call.1} parent=1 // pred_check
      _
    $region51: #{tpu_custom_call.1} parent=1 // pred_check_branch
      %647 = sbr.rel (0) target = $region53
    $region52: #{tpu_custom_call.1} parent=1 // pred_region
      %649 = vsyncadd [#allocation6], 0
      %s651 = sshll.u32 [#allocation13], 4
      %s652 = int_to_ptr.vmem [resolvable:$true] %s651
      %s653 = sshll.u32 %s7, 4
      %s654 = int_to_ptr.hbm [resolvable:$true] %s653
      %656 = dma.vmem_to_hbm [thread:$0]  %s652, 128, %s654, [#allocation6]
    $region53: #{tpu_custom_call.1} parent=1 // pred_fallthru
      _
    // Predicated region
    $region54: #{tpu_custom_call.1} parent=1 // pred_check
      _
    $region55: #{tpu_custom_call.1} parent=1 // pred_check_branch
      %658 = sbr.rel (0) target = $region57
    $region56: #{tpu_custom_call.1} parent=1 // pred_region
      %660 = dma.done [#allocation6], 128
    $region57: #{tpu_custom_call.1} parent=1 // pred_fallthru
      _
    %661 = vsyncpa [#allocation5], 1
    %662 = vsyncpa [#allocation8], 1
    %663 = vsyncpa [#allocation11], 1
    %664 = vsyncpa [#allocation6], 1

</llo_original>
